<compile_context>
chip_gen: v6e
topology: v6e:2x2x1
jax: 0.10.0
libtpu: 0.0.40
codegen_flags: <defaults>
</compile_context>

<pallas_src>
import functools

import jax
import jax.numpy as jnp
from jax.experimental import pallas as pl
from jax.experimental.pallas import tpu as pltpu

NUM_GROUPS = 32
EPS = 1e-6
_VMEM_LIMIT = 32 * 1024 * 1024   # explicit scoped-VMEM budget


def _tile(n, target):
    """Largest divisor of n that is <= target and a multiple of 128, else n (full)."""
    if n <= target:
        return n
    for t in range(target, 127, -1):
        if n % t == 0 and t % 128 == 0:
            return t
    return n


# ---------------------------------------------------------------------------
# Pass 0: per-channel sum / sumsq over spatial, accumulated across HW tiles.
# ---------------------------------------------------------------------------
def _stats_kernel(x_ref, s_ref, ss_ref):
    j = pl.program_id(1)

    @pl.when(j == 0)
    def _():
        s_ref[...] = jnp.zeros_like(s_ref)
        ss_ref[...] = jnp.zeros_like(ss_ref)

    x = x_ref[0]                                              # (TS, Cp) f32
    s_ref[0] = s_ref[0] + jnp.sum(x, axis=0, keepdims=True)
    ss_ref[0] = ss_ref[0] + jnp.sum(x * x, axis=0, keepdims=True)


# ---------------------------------------------------------------------------
# Pass A: GroupNorm (as per-channel affine) + fused QKV projection.
# ---------------------------------------------------------------------------
def _norm_qkv_kernel(x_ref, a_ref, b_ref, wqkv_ref, bqkv_ref,
                     q_ref, k_ref, v_ref, *, cp, scale):
    x = x_ref[0]                                              # (TS, Cp) f32
    hn = x * a_ref[0] + b_ref[0]                              # folded GroupNorm
    qkv = jnp.dot(hn.astype(jnp.bfloat16), wqkv_ref[...],
                  preferred_element_type=jnp.float32) + bqkv_ref[0]   # (TS, 3Cp)
    q = qkv[:, 0:cp] * scale                                  # fold c^-0.5 into q
    k = qkv[:, cp:2 * cp]
    v = qkv[:, 2 * cp:3 * cp]
    q_ref[0] = q.astype(jnp.bfloat16)
    k_ref[0] = k.astype(jnp.bfloat16)
    v_ref[0] = v.astype(jnp.bfloat16)


# ---------------------------------------------------------------------------
# Pass B: flash attention (online softmax over key tiles) + proj_out + residual.
# ---------------------------------------------------------------------------
def _flash_attn_proj_kernel(x_ref, q_ref, k_ref, v_ref, wp_ref, bp_ref, o_ref,
                            m_ref, l_ref, acc_ref):
    kv = pl.program_id(2)

    @pl.when(kv == 0)
    def _():
        m_ref[...] = jnp.full(m_ref.shape, -jnp.inf, jnp.float32)
        l_ref[...] = jnp.zeros_like(l_ref)
        acc_ref[...] = jnp.zeros_like(acc_ref)

    # logits tile: (TQ, TK), contract channel dims directly (no transpose needed),
    # bf16 operands, f32 MXU accumulate.
    s = jax.lax.dot_general(q_ref[0], k_ref[0],
                            dimension_numbers=(((1,), (1,)), ((), ())),
                            preferred_element_type=jnp.float32)
    m_prev = m_ref[...]
    m_new = jnp.maximum(m_prev, jnp.max(s, axis=-1, keepdims=True))
    alpha = jnp.exp(m_prev - m_new)
    p = jnp.exp(s - m_new)                                    # f32 softmax math
    l_ref[...] = alpha * l_ref[...] + jnp.sum(p, axis=-1, keepdims=True)
    acc_ref[...] = alpha * acc_ref[...] + jnp.dot(
        p.astype(jnp.bfloat16), v_ref[0], preferred_element_type=jnp.float32)
    m_ref[...] = m_new

    @pl.when(kv == pl.num_programs(2) - 1)
    def _():
        ho = acc_ref[...] * pl.reciprocal(l_ref[...], approx=True)
        ho = jnp.dot(ho.astype(jnp.bfloat16), wp_ref[...],
                     preferred_element_type=jnp.float32) + bp_ref[0]
        o_ref[0] = x_ref[0] + ho                              # residual in f32


# ---------------------------------------------------------------------------
# Wrapper
# ---------------------------------------------------------------------------
def attn_block(x_nchw, params):
    """x_nchw: (B, C, H, W) float32.  params: dict of AttnBlock parameters."""
    b, c, h, w = x_nchw.shape
    assert c % NUM_GROUPS == 0, "GroupNorm(32) requires channels % 32 == 0"
    hw = h * w
    cg = c // NUM_GROUPS
    cp = ((c + 127) // 128) * 128                  # lane-dense padded channel count
    cp3 = 3 * cp

    # NCHW -> (B, HW, Cp) channels-last, zero-padded channels.
    x = jnp.transpose(x_nchw.reshape(b, c, hw), (0, 2, 1)).astype(jnp.float32)
    if cp != c:
        x = jnp.pad(x, ((0, 0), (0, 0), (0, cp - c)))

    ts = _tile(hw, 512)       # spatial tile for stats / norm+qkv
    tq = _tile(hw, 256)       # query tile for flash attention
    tk = _tile(hw, 512)       # key/value tile
    n_ts, n_q, n_k = hw // ts, hw // tq, hw // tk

    # ---- pass 0: GroupNorm statistics ----
    s_sum, s_sq = pl.pallas_call(
        _stats_kernel,
        out_shape=(jax.ShapeDtypeStruct((b, 1, cp), jnp.float32),
                   jax.ShapeDtypeStruct((b, 1, cp), jnp.float32)),
        grid_spec=pltpu.PrefetchScalarGridSpec(
            num_scalar_prefetch=0,
            grid=(b, n_ts),
            in_specs=[pl.BlockSpec((1, ts, cp), lambda i, j: (i, j, 0))],
            out_specs=[pl.BlockSpec((1, 1, cp), lambda i, j: (i, 0, 0)),
                       pl.BlockSpec((1, 1, cp), lambda i, j: (i, 0, 0))],
        ),
        compiler_params=pltpu.CompilerParams(
            dimension_semantics=("parallel", "arbitrary"),
            vmem_limit_bytes=_VMEM_LIMIT),
    )(x)

    # ---- tiny O(B*C) group math in plain JAX: fold GroupNorm into affine ----
    n_elem = float(hw * cg)
    s_c = s_sum[:, 0, :c]
    ss_c = s_sq[:, 0, :c]
    mean_g = s_c.reshape(b, NUM_GROUPS, cg).sum(-1) / n_elem
    var_g = ss_c.reshape(b, NUM_GROUPS, cg).sum(-1) / n_elem - mean_g * mean_g
    rstd_g = jax.lax.rsqrt(var_g + EPS)
    mean_c = jnp.repeat(mean_g, cg, axis=1)                   # (B, C)
    rstd_c = jnp.repeat(rstd_g, cg, axis=1)
    gamma = params["norm_w"].astype(jnp.float32)[None, :]
    beta = params["norm_b"].astype(jnp.float32)[None, :]
    a_c = gamma * rstd_c
    b_c = beta - mean_c * a_c
    a_all = jnp.pad(a_c, ((0, 0), (0, cp - c)))[:, None, :]   # (B, 1, Cp)
    b_all = jnp.pad(b_c, ((0, 0), (0, cp - c)))[:, None, :]

    # ---- packed / padded weights: (in, out) layout, bf16 for the MXU ----
    def w2(w4):
        return w4.reshape(w4.shape[0], w4.shape[1]).astype(jnp.float32)

    wq, wk, wv, wpj = (w2(params["q_w"]), w2(params["k_w"]),
                       w2(params["v_w"]), w2(params["proj_w"]))
    wqkv = jnp.zeros((cp, cp3), jnp.float32)
    wqkv = (wqkv.at[:c, 0:c].set(wq.T)
                 .at[:c, cp:cp + c].set(wk.T)
                 .at[:c, 2 * cp:2 * cp + c].set(wv.T)).astype(jnp.bfloat16)
    bqkv = jnp.zeros((1, cp3), jnp.float32)
    bqkv = (bqkv.at[0, 0:c].set(params["q_b"])
                 .at[0, cp:cp + c].set(params["k_b"])
                 .at[0, 2 * cp:2 * cp + c].set(params["v_b"]))
    wp_p = jnp.zeros((cp, cp), jnp.float32).at[:c, :c].set(wpj.T).astype(jnp.bfloat16)
    bp_p = jnp.zeros((1, cp), jnp.float32).at[0, :c].set(params["proj_b"])

    scale = float(int(c)) ** (-0.5)

    # ---- pass A: GroupNorm affine + fused QKV projection ----
    rep_w = pl.BlockSpec((cp, cp3), lambda i, j: (0, 0))
    rep_b = pl.BlockSpec((1, cp3), lambda i, j: (0, 0))
    rep_ab = pl.BlockSpec((1, 1, cp), lambda i, j: (i, 0, 0))
    qkv_spec = pl.BlockSpec((1, ts, cp), lambda i, j: (i, j, 0))
    q, k, v = pl.pallas_call(
        functools.partial(_norm_qkv_kernel, cp=cp, scale=scale),
        out_shape=(jax.ShapeDtypeStruct((b, hw, cp), jnp.bfloat16),
                   jax.ShapeDtypeStruct((b, hw, cp), jnp.bfloat16),
                   jax.ShapeDtypeStruct((b, hw, cp), jnp.bfloat16)),
        grid_spec=pltpu.PrefetchScalarGridSpec(
            num_scalar_prefetch=0,
            grid=(b, n_ts),
            in_specs=[
                pl.BlockSpec((1, ts, cp), lambda i, j: (i, j, 0)),   # x
                rep_ab, rep_ab,                                       # affine a, b
                rep_w, rep_b,                                         # W_qkv, b_qkv
            ],
            out_specs=[qkv_spec, qkv_spec, qkv_spec],                # q, k, v
        ),
        compiler_params=pltpu.CompilerParams(
            dimension_semantics=("parallel", "parallel"),
            vmem_limit_bytes=_VMEM_LIMIT),
    )(x, a_all, b_all, wqkv, bqkv)

    # ---- pass B: flash attention + proj_out + residual ----
    out = pl.pallas_call(
        _flash_attn_proj_kernel,
        out_shape=jax.ShapeDtypeStruct((b, hw, cp), jnp.float32),
        grid_spec=pltpu.PrefetchScalarGridSpec(
            num_scalar_prefetch=0,
            grid=(b, n_q, n_k),
            in_specs=[
                pl.BlockSpec((1, tq, cp), lambda i, j, k: (i, j, 0)),  # x (residual)
                pl.BlockSpec((1, tq, cp), lambda i, j, k: (i, j, 0)),  # q tile
                pl.BlockSpec((1, tk, cp), lambda i, j, k: (i, k, 0)),  # k tile
                pl.BlockSpec((1, tk, cp), lambda i, j, k: (i, k, 0)),  # v tile
                pl.BlockSpec((cp, cp), lambda i, j, k: (0, 0)),        # W_proj
                pl.BlockSpec((1, cp), lambda i, j, k: (0, 0)),         # b_proj
            ],
            out_specs=pl.BlockSpec((1, tq, cp), lambda i, j, k: (i, j, 0)),
            scratch_shapes=[
                pltpu.VMEM((tq, 1), jnp.float32),    # running row max
                pltpu.VMEM((tq, 1), jnp.float32),    # running denominator
                pltpu.VMEM((tq, cp), jnp.float32),   # output accumulator
            ],
        ),
        compiler_params=pltpu.CompilerParams(
            dimension_semantics=("parallel", "parallel", "arbitrary"),
            vmem_limit_bytes=_VMEM_LIMIT),
    )(x, q, k, v, wp_p, bp_p)

    # (B, HW, Cp) -> NCHW, drop channel padding.
    out = out[:, :, :c]
    return jnp.transpose(out, (0, 2, 1)).reshape(b, c, h, w)


# ---------------------------------------------------------------------------
# Pure-JAX reference (matches the PyTorch forward), test harness.
# ---------------------------------------------------------------------------
def _reference(x_nchw, params):
    b, c, h, w = x_nchw.shape
    hw = h * w
    xf = x_nchw.astype(jnp.float32)

    xg = xf.reshape(b, NUM_GROUPS, c // NUM_GROUPS, h, w)
    mean = jnp.mean(xg, axis=(2, 3, 4), keepdims=True)
    var = jnp.mean((xg - mean) ** 2, axis=(2, 3, 4), keepdims=True)
    hn = ((xg - mean) / jnp.sqrt(var + EPS)).reshape(b, c, h, w)
    hn = hn * params["norm_w"][None, :, None, None] + params["norm_b"][None, :, None, None]

    def conv1x1(t, w4, bias):
        w2 = w4.reshape(w4.shape[0], w4.shape[1])
        return jnp.einsum("oc,bchw->bohw", w2, t) + bias[None, :, None, None]

    q = conv1x1(hn, params["q_w"], params["q_b"]).reshape(b, c, hw)
    k = conv1x1(hn, params["k_w"], params["k_b"]).reshape(b, c, hw)
    v = conv1x1(hn, params["v_w"], params["v_b"]).reshape(b, c, hw)

    q = jnp.transpose(q, (0, 2, 1))
    w_ = jnp.einsum("bnc,bcm->bnm", q, k) * (int(c) ** (-0.5))
    w_ = jax.nn.softmax(w_, axis=2)
    w_t = jnp.transpose(w_, (0, 2, 1))
    h_ = jnp.einsum("bck,bkn->bcn", v, w_t).reshape(b, c, h, w)
    h_ = conv1x1(h_, params["proj_w"], params["proj_b"])
    return xf + h_


def _init_params(key, c):
    keys = jax.random.split(key, 9)
    s = 0.05
    return {
        "norm_w": jnp.ones((c,), jnp.float32) + s * jax.random.normal(keys[0], (c,)),
        "norm_b": s * jax.random.normal(keys[1], (c,)),
        "q_w": s * jax.random.normal(keys[2], (c, c, 1, 1), jnp.float32),
        "q_b": s * jax.random.normal(keys[3], (c,), jnp.float32),
        "k_w": s * jax.random.normal(keys[4], (c, c, 1, 1), jnp.float32),
        "k_b": s * jax.random.normal(keys[5], (c,), jnp.float32),
        "v_w": s * jax.random.normal(keys[6], (c, c, 1, 1), jnp.float32),
        "v_b": s * jax.random.normal(keys[7], (c,), jnp.float32),
        "proj_w": s * jax.random.normal(keys[8], (c, c, 1, 1), jnp.float32),
        "proj_b": jnp.zeros((c,), jnp.float32),
    }


if __name__ == "__main__":
    # GroupNorm(num_groups=32) requires channels % 32 == 0 -> smallest clean C is 32.
    B, C, H, W = 2, 32, 16, 16
    key = jax.random.PRNGKey(0)
    kx, kp = jax.random.split(key)
    x = jax.random.normal(kx, (B, C, H, W), dtype=jnp.float32)
    params = _init_params(kp, C)

    out = jax.block_until_ready(attn_block(x, params))
    ref = jax.block_until_ready(_reference(x, params))

    assert out.shape == (B, C, H, W)
    err = float(jnp.max(jnp.abs(out - ref)))
    # bf16 MXU operands + approx reciprocal: loosened from 1e-4 but still tight
    # enough to catch structural errors (the residual passes through exactly).
    assert err < 2e-3, f"max abs error {err}"
    print("KERNEL_OK")
</pallas_src>

<mosaic_0001>
module attributes {stable_mosaic.version = 11 : i64} {
  func.func @_stats_kernel(%arg0: i32, %arg1: i32, %arg2: memref<1x256x128xf32, #tpu.memory_space<vmem>>, %arg3: memref<1x1x128xf32, #tpu.memory_space<vmem>>, %arg4: memref<1x1x128xf32, #tpu.memory_space<vmem>>) attributes {dimension_semantics = [#tpu.dimension_semantics<parallel>, #tpu.dimension_semantics<arbitrary>], iteration_bounds = array<i64: 2, 1>, scalar_prefetch = 0 : i64, scratch_operands = 0 : i64, tpu.core_type = #tpu.core_type<tc>, window_params = [{transform_indices = @transform_0, window_bounds = array<i64: 1, 256, 128>}, {transform_indices = @transform_1, window_bounds = array<i64: 1, 1, 128>}, {transform_indices = @transform_2, window_bounds = array<i64: 1, 1, 128>}]} {
    %c0_i32 = arith.constant 0 : i32
    %0 = arith.cmpi eq, %arg1, %c0_i32 : i32
    %1 = arith.extui %0 : i1 to i32
    %c0_i32_0 = arith.constant 0 : i32
    %2 = arith.cmpi ne, %1, %c0_i32_0 : i32
    scf.if %2 {
      %cst_16 = arith.constant 0.000000e+00 : f32
      %22 = vector.broadcast %cst_16 : f32 to vector<1x1x128xf32>
      %c0_17 = arith.constant 0 : index
      %c0_18 = arith.constant 0 : index
      %c0_19 = arith.constant 0 : index
      %23 = vector.load %arg3[%c0_17, %c0_18, %c0_19] : memref<1x1x128xf32, #tpu.memory_space<vmem>>, vector<1x1x128xf32>
      tpu.vector_store %arg3[%c0_17, %c0_18, %c0_19], %22 {strides = array<i32>} : memref<1x1x128xf32, #tpu.memory_space<vmem>>, vector<1x1x128xf32>,
      %cst_20 = arith.constant 0.000000e+00 : f32
      %24 = vector.broadcast %cst_20 : f32 to vector<1x1x128xf32>
      %c0_21 = arith.constant 0 : index
      %c0_22 = arith.constant 0 : index
      %c0_23 = arith.constant 0 : index
      %25 = vector.load %arg4[%c0_21, %c0_22, %c0_23] : memref<1x1x128xf32, #tpu.memory_space<vmem>>, vector<1x1x128xf32>
      tpu.vector_store %arg4[%c0_21, %c0_22, %c0_23], %24 {strides = array<i32>} : memref<1x1x128xf32, #tpu.memory_space<vmem>>, vector<1x1x128xf32>,
    } else {
    }
    %c0 = arith.constant 0 : index
    %c0_1 = arith.constant 0 : index
    %c0_2 = arith.constant 0 : index
    %3 = vector.load %arg2[%c0, %c0_1, %c0_2] : memref<1x256x128xf32, #tpu.memory_space<vmem>>, vector<1x256x128xf32>
    %4 = vector.shape_cast %3 : vector<1x256x128xf32> to vector<256x128xf32>
    %c0_3 = arith.constant 0 : index
    %c0_4 = arith.constant 0 : index
    %c0_5 = arith.constant 0 : index
    %5 = vector.load %arg3[%c0_3, %c0_4, %c0_5] : memref<1x1x128xf32, #tpu.memory_space<vmem>>, vector<1x1x128xf32>
    %6 = vector.shape_cast %5 : vector<1x1x128xf32> to vector<1x128xf32>
    %cst = arith.constant dense<0.000000e+00> : vector<128xf32>
    %7 = vector.multi_reduction <add>, %4, %cst [0] : vector<256x128xf32> to vector<128xf32>
    %8 = vector.shape_cast %7 : vector<128xf32> to vector<1x128xf32>
    %9 = arith.addf %6, %8 : vector<1x128xf32>
    %c0_6 = arith.constant 0 : index
    %c0_7 = arith.constant 0 : index
    %c0_8 = arith.constant 0 : index
    %10 = vector.load %arg3[%c0_6, %c0_7, %c0_8] : memref<1x1x128xf32, #tpu.memory_space<vmem>>, vector<1x1x128xf32>
    %11 = vector.shape_cast %10 : vector<1x1x128xf32> to vector<1x128xf32>
    %12 = vector.shape_cast %9 : vector<1x128xf32> to vector<1x1x128xf32>
    tpu.vector_store %arg3[%c0_6, %c0_7, %c0_8], %12 {strides = array<i32>} : memref<1x1x128xf32, #tpu.memory_space<vmem>>, vector<1x1x128xf32>,
    %c0_9 = arith.constant 0 : index
    %c0_10 = arith.constant 0 : index
    %c0_11 = arith.constant 0 : index
    %13 = vector.load %arg4[%c0_9, %c0_10, %c0_11] : memref<1x1x128xf32, #tpu.memory_space<vmem>>, vector<1x1x128xf32>
    %14 = vector.shape_cast %13 : vector<1x1x128xf32> to vector<1x128xf32>
    %15 = arith.mulf %4, %4 : vector<256x128xf32>
    %cst_12 = arith.constant dense<0.000000e+00> : vector<128xf32>
    %16 = vector.multi_reduction <add>, %15, %cst_12 [0] : vector<256x128xf32> to vector<128xf32>
    %17 = vector.shape_cast %16 : vector<128xf32> to vector<1x128xf32>
    %18 = arith.addf %14, %17 : vector<1x128xf32>
    %c0_13 = arith.constant 0 : index
    %c0_14 = arith.constant 0 : index
    %c0_15 = arith.constant 0 : index
    %19 = vector.load %arg4[%c0_13, %c0_14, %c0_15] : memref<1x1x128xf32, #tpu.memory_space<vmem>>, vector<1x1x128xf32>
    %20 = vector.shape_cast %19 : vector<1x1x128xf32> to vector<1x128xf32>
    %21 = vector.shape_cast %18 : vector<1x128xf32> to vector<1x1x128xf32>
    tpu.vector_store %arg4[%c0_13, %c0_14, %c0_15], %21 {strides = array<i32>} : memref<1x1x128xf32, #tpu.memory_space<vmem>>, vector<1x1x128xf32>,
    return
  }
  func.func @transform_0(%arg0: i32, %arg1: i32) -> (i32, i32, i32) {
    %c0_i32 = arith.constant 0 : i32
    %c0_i32_0 = arith.constant 0 : i32
    return %arg0, %arg1, %c0_i32 : i32, i32, i32
  }
  func.func @transform_1(%arg0: i32, %arg1: i32) -> (i32, i32, i32) {
    %c0_i32 = arith.constant 0 : i32
    %c0_i32_0 = arith.constant 0 : i32
    %c0_i32_1 = arith.constant 0 : i32
    return %arg0, %c0_i32, %c0_i32_0 : i32, i32, i32
  }
  func.func @transform_2(%arg0: i32, %arg1: i32) -> (i32, i32, i32) {
    %c0_i32 = arith.constant 0 : i32
    %c0_i32_0 = arith.constant 0 : i32
    %c0_i32_1 = arith.constant 0 : i32
    return %arg0, %c0_i32, %c0_i32_0 : i32, i32, i32
  }
}

</mosaic_0001>

<llo_original>
// kernel: tpu_custom_call.1
$region0: #{tpu_custom_call.1}
  #allocation0 [shape = 'u32[]', space=smem, size = 0x4, offset = 0x4, fixed_abs, tag = 'smem constant byte address 0x4 - core index']
  #allocation1 [shape = 'u32[144,128]{1,0:T(1,128)}', space=vmem, size = 0x12000, scoped, tag = 'internal scratch']
  %s0 = inlined_call_operand.hbm [shape: f32[2,256,128], index: 0, kind: input, shape index: {}]
  %s1 = inlined_call_operand.hbm [shape: f32[2,1,128], index: 1, kind: output, shape index: {0}]
  %s2 = inlined_call_operand.hbm [shape: f32[2,1,128], index: 2, kind: output, shape index: {1}]
  %3 = xla_tuple %s1, %s2
  %s4 = sld [smem:[#allocation0]]
  $region53: #{tpu_custom_call.1} parent=0
    _
  %s6 = ssub.s32 1, %s4
  %s7 = scalar_select 0, %s6, %s4
  $region1: #{tpu_custom_call.1} parent=0
    #allocation2 [shape = 'u8[262144]{0}', space=vmem, size = 0x40000, scoped, tag = 'input window, operand 0']
    #allocation3 [shape = 's32[2]{0}', space=sflag, size = 0x8, scoped, tag = 'scoped memory for tpu_custom_call.1']
    #allocation4 [shape = 's32[2]{0}', space=sflag, size = 0x8, scoped, tag = 'scoped memory for tpu_custom_call.1']
    #allocation5 [shape = 'u8[1024]{0}', space=vmem, size = 0x400, scoped, tag = 'output window, operand 0']
    #allocation6 [shape = 'u8[1024]{0}', space=vmem, size = 0x400, scoped, tag = 'output window, operand 1']
    #allocation7 [shape = 's32[2]{0}', space=sflag, size = 0x8, scoped, tag = 'scoped memory for tpu_custom_call.1']
    %8 = vsyncpa [#allocation3], 0
    %s9 = scalar_lea.sflag [#allocation3], 1
    %10 = vsyncpa %s9, 0
    %11 = vsyncpa [#allocation4], 0
    %s12 = scalar_lea.sflag [#allocation4], 1
    %13 = vsyncpa %s12, 0
    %14 = vsyncpa [#allocation7], 0
    %s15 = scalar_lea.sflag [#allocation7], 1
    %16 = vsyncpa %s15, 0
    loop: start=0, step=1, limit=4
    $region2: #{tpu_custom_call.1} parent=1 // loop_pre_header
      _
    $region3: #{tpu_custom_call.1} parent=1 // loop_header
      %s18 = sphi 0, %s22
      %p19 = scmp.ge.s32.totalorder %s18, 4
      %s25 = sphi 0, %s37
      %s26 = sphi 0, %s33
      %s27 = sphi 0, %s25
      %s28 = sphi 0, %s26
      %s29 = sphi 0, %s27
      %s30 = sphi 0, %s28
      %s42 = sphi 0, %s44
      %s45 = sphi 0, %s42
      %s46 = sphi 0, %s45
      %s62 = sphi 0, %s46
      %s68 = sphi 0, %s70
      %s71 = sphi 0, %s68
      %s72 = sphi 0, %s71
      %s88 = sphi 0, %s72
      %s94 = sphi 0, %s96
      %s97 = sphi 0, %s94
      %s98 = sphi 0, %s97
      %s114 = sphi 0, %s98
    $region4: #{tpu_custom_call.1} parent=1 // loop_header_branch
      %21 = sbr.rel (%p19) target = $region8
    $region5: #{tpu_custom_call.1} parent=1 // loop_body
      %s23 = ssub.s32 %s18, 1
      %s24 = ssub.s32 %s18, 2
      %s31 = sadd.s32 1, %s26
      %p32 = scmp.ge.s32.totalorder %s31, 1
      %s33 = scalar_select %p32, 0, %s31
      %s34 = sadd.s32 1, %s25
      %s35 = scalar_select %p32, %s34, %s25
      %p36 = scmp.ge.s32.totalorder %s35, 2
      %s37 = scalar_select %p36, 0, %s35
      %s38 = ssub.s32 %s25, %s37
      %s39 = ssub.s32 %s26, %s33
      %s40 = sor.u32 %s38, %s39
      %p41 = scmp.eq.s32.totalorder %s40, 0
      %s43 = sadd.s32 %s42, 1
      %s44 = scalar_select %p41, %s42, %s43
      %p47 = pneg %p41
      %p48 = scmp.eq.s32.totalorder %s18, 1
      %p49 = por %p47, %p48
      %p50 = scmp.ne.s32.totalorder %s42, %s45
      %p51 = scmp.eq.s32.totalorder %s18, 0
      %p52 = por %p50, %p51
      %p53 = scmp.ne.s32.totalorder %s42, %s45
      %p54 = scmp.eq.s32.totalorder %s23, 1
      %p55 = por %p53, %p54
      %p56 = scmp.ne.s32.totalorder %s45, %s46
      %p57 = scmp.eq.s32.totalorder %s23, 0
      %p58 = por %p56, %p57
      %p59 = scmp.ne.s32.totalorder %s45, %s46
      %p60 = scmp.eq.s32.totalorder %s24, 1
      %p61 = por %p59, %p60
      %p63 = scmp.ne.s32.totalorder %s46, %s62
      %p64 = scmp.eq.s32.totalorder %s24, 0
      %p65 = por %p63, %p64
      %s66 = ssub.s32 %s25, %s37
      %p67 = scmp.eq.s32.totalorder %s66, 0
      %s69 = sadd.s32 %s68, 1
      %s70 = scalar_select %p67, %s68, %s69
      %p73 = pneg %p67
      %p74 = scmp.eq.s32.totalorder %s18, 1
      %p75 = por %p73, %p74
      %p76 = scmp.ne.s32.totalorder %s68, %s71
      %p77 = scmp.eq.s32.totalorder %s18, 0
      %p78 = por %p76, %p77
      %p79 = scmp.ne.s32.totalorder %s68, %s71
      %p80 = scmp.eq.s32.totalorder %s23, 1
      %p81 = por %p79, %p80
      %p82 = scmp.ne.s32.totalorder %s71, %s72
      %p83 = scmp.eq.s32.totalorder %s23, 0
      %p84 = por %p82, %p83
      %p85 = scmp.ne.s32.totalorder %s71, %s72
      %p86 = scmp.eq.s32.totalorder %s24, 1
      %p87 = por %p85, %p86
      %p89 = scmp.ne.s32.totalorder %s72, %s88
      %p90 = scmp.eq.s32.totalorder %s24, 0
      %p91 = por %p89, %p90
      %s92 = ssub.s32 %s25, %s37
      %p93 = scmp.eq.s32.totalorder %s92, 0
      %s95 = sadd.s32 %s94, 1
      %s96 = scalar_select %p93, %s94, %s95
      %p99 = pneg %p93
      %p100 = scmp.eq.s32.totalorder %s18, 1
      %p101 = por %p99, %p100
      %p102 = scmp.ne.s32.totalorder %s94, %s97
      %p103 = scmp.eq.s32.totalorder %s18, 0
      %p104 = por %p102, %p103
      %p105 = scmp.ne.s32.totalorder %s94, %s97
      %p106 = scmp.eq.s32.totalorder %s23, 1
      %p107 = por %p105, %p106
      %p108 = scmp.ne.s32.totalorder %s97, %s98
      %p109 = scmp.eq.s32.totalorder %s23, 0
      %p110 = por %p108, %p109
      %p111 = scmp.ne.s32.totalorder %s97, %s98
      %p112 = scmp.eq.s32.totalorder %s24, 1
      %p113 = por %p111, %p112
      %p115 = scmp.ne.s32.totalorder %s98, %s114
      %p116 = scmp.eq.s32.totalorder %s24, 0
      %p117 = por %p115, %p116
      %p118 = scmp.le.s32.totalorder 1, %s18
      %p119 = scmp.lt.s32.totalorder %s18, 3
      %p120 = pnand %p118, %p119
      %p121 = pneg %p120
      // Predicated region
      $region9: #{tpu_custom_call.1} parent=5 // pred_check
        _
      $region10: #{tpu_custom_call.1} parent=5 // pred_check_branch
        %123 = sbr.rel (%p120) target = $region12
      $region11: #{tpu_custom_call.1} parent=5 // pred_region
        %s124 = ssub.s32 %s18, 1
      $region12: #{tpu_custom_call.1} parent=5 // pred_fallthru
        _
      %p125 = scmp.lt.s32.totalorder %s18, 2
      // Predicated region
      $region13: #{tpu_custom_call.1} parent=5 // pred_check
        %p126 = pneg %p125
      $region14: #{tpu_custom_call.1} parent=5 // pred_check_branch
        %128 = sbr.rel (%p126) target = $region16
      $region15: #{tpu_custom_call.1} parent=5 // pred_region
        // Predicated region
        $region17: #{tpu_custom_call.1} parent=15 // pred_check
          %p129 = pneg %p52
        $region18: #{tpu_custom_call.1} parent=15 // pred_check_branch
          %131 = sbr.rel (%p129) target = $region20
        $region19: #{tpu_custom_call.1} parent=15 // pred_region
          %s132 = sand.u32 %s42, 1
          %s133 = scalar_lea.sflag [#allocation3], %s132
          %s134 = sand.u32 %s42, 1
          %s135 = smul.addr %s134, 256
          %s136 = scalar_lea.vmem [#allocation2], %s135
          %s137 = smul.u32 32, %s26
          %s139 = ssub.s32 4096, 4096
          %140 = vsyncadd %s133, %s139
          %s141 = smul.addr %s25, 32
          %s142 = sadd.s32 %s137, %s141
          %s143 = smul.addr %s142, 128
          %s144 = scalar_lea.hbm %s0, %s143
          %s145 = sshll.u32 %s136, 4
          %s146 = int_to_ptr.vmem [resolvable:$true] %s145
          %151 = dma.hbm_to_vmem [thread:$0]  %s144, 4096, %s146, %s133, 128, 128, 8
        $region20: #{tpu_custom_call.1} parent=15 // pred_fallthru
          _
      $region16: #{tpu_custom_call.1} parent=5 // pred_fallthru
        _
      %p152 = scmp.le.s32.totalorder 1, %s18
      %p153 = scmp.lt.s32.totalorder %s18, 3
      %p154 = pnand %p152, %p153
      %p155 = pneg %p154
      // Predicated region
      $region21: #{tpu_custom_call.1} parent=5 // pred_check
        _
      $region22: #{tpu_custom_call.1} parent=5 // pred_check_branch
        %157 = sbr.rel (%p154) target = $region24
      $region23: #{tpu_custom_call.1} parent=5 // pred_region
        %s158 = ssub.s32 %s18, 1
        %s159 = sand.u32 %s45, 1
        %s160 = scalar_lea.sflag [#allocation3], %s159
        %s161 = sand.u32 %s45, 1
        %s162 = smul.addr %s161, 256
        %s163 = scalar_lea.vmem [#allocation2], %s162
        // Predicated region
        $region25: #{tpu_custom_call.1} parent=23 // pred_check
          %p164 = pneg %p58
        $region26: #{tpu_custom_call.1} parent=23 // pred_check_branch
          %166 = sbr.rel (%p164) target = $region28
        $region27: #{tpu_custom_call.1} parent=23 // pred_region
          %167 = dma.done %s160, 4096
        $region28: #{tpu_custom_call.1} parent=23 // pred_fallthru
          _
        %s168 = sand.u32 %s45, 1
        %s169 = scalar_lea.sflag [#allocation3], %s168
        %s170 = sand.u32 %s45, 1
        %s171 = smul.addr %s170, 256
        %s172 = scalar_lea.vmem [#allocation2], %s171
        %p173 = pneg %p58
        %p174 = pneg %p55
        %p175 = pneg %p84
        %p176 = pneg %p81
        %s177 = sand.u32 %s71, 1
        %s178 = scalar_lea.sflag [#allocation4], %s177
        %s179 = sand.u32 %s71, 1
        %s180 = scalar_lea.vmem [#allocation5], %s179
        %p181 = pneg %p110
        %p182 = pneg %p107
        %s183 = sand.u32 %s97, 1
        %s184 = scalar_lea.sflag [#allocation7], %s183
        %s185 = sand.u32 %s97, 1
        %s186 = scalar_lea.vmem [#allocation6], %s185
        %s187 = smul.u32 32, %s28
        %p188 = scmp.eq.s32.totalorder %s28, 0
        // Predicated region
        $region29: #{tpu_custom_call.1} parent=23 // pred_check
          %p189 = pneg %p188
        $region30: #{tpu_custom_call.1} parent=23 // pred_check_branch
          %191 = sbr.rel (%p189) target = $region32
        $region31: #{tpu_custom_call.1} parent=23 // pred_region
          %192 = vst [vmem:[%s180] sm:$0x1] 0.0
          %193 = vst [vmem:[%s186] sm:$0x1] 0.0
        $region32: #{tpu_custom_call.1} parent=23 // pred_fallthru
          _
        %v194 = vld [vmem:[%s163] sm:$0xff]
        %v195 = vld [vmem:[%s163 + $0x8] sm:$0xff]
        %v196 = vld [vmem:[%s163 + $0x10] sm:$0xff]
        %v197 = vld [vmem:[%s163 + $0x18] sm:$0xff]
        %v198 = vld [vmem:[%s163 + $0x20] sm:$0xff]
        %v199 = vld [vmem:[%s163 + $0x28] sm:$0xff]
        %v200 = vld [vmem:[%s163 + $0x30] sm:$0xff]
        %v201 = vld [vmem:[%s163 + $0x38] sm:$0xff]
        %v202 = vld [vmem:[%s163 + $0x40] sm:$0xff]
        %v203 = vld [vmem:[%s163 + $0x48] sm:$0xff]
        %v204 = vld [vmem:[%s163 + $0x50] sm:$0xff]
        %v205 = vld [vmem:[%s163 + $0x58] sm:$0xff]
        %v206 = vld [vmem:[%s163 + $0x60] sm:$0xff]
        %v207 = vld [vmem:[%s163 + $0x68] sm:$0xff]
        %v208 = vld [vmem:[%s163 + $0x70] sm:$0xff]
        %v209 = vld [vmem:[%s163 + $0x78] sm:$0xff]
        %v210 = vld [vmem:[%s163 + $0x80] sm:$0xff]
        %v211 = vld [vmem:[%s163 + $0x88] sm:$0xff]
        %v212 = vld [vmem:[%s163 + $0x90] sm:$0xff]
        %v213 = vld [vmem:[%s163 + $0x98] sm:$0xff]
        %v214 = vld [vmem:[%s163 + $0xa0] sm:$0xff]
        %v215 = vld [vmem:[%s163 + $0xa8] sm:$0xff]
        %v216 = vld [vmem:[%s163 + $0xb0] sm:$0xff]
        %v217 = vld [vmem:[%s163 + $0xb8] sm:$0xff]
        %v218 = vld [vmem:[%s163 + $0xc0] sm:$0xff]
        %v219 = vld [vmem:[%s163 + $0xc8] sm:$0xff]
        %v220 = vld [vmem:[%s163 + $0xd0] sm:$0xff]
        %v221 = vld [vmem:[%s163 + $0xd8] sm:$0xff]
        %v222 = vld [vmem:[%s163 + $0xe0] sm:$0xff]
        %v223 = vld [vmem:[%s163 + $0xe8] sm:$0xff]
        %v224 = vld [vmem:[%s163 + $0xf0] sm:$0xff]
        %v225 = vld [vmem:[%s163 + $0xf8] sm:$0xff]
        %v226 = vld [vmem:[%s180] sm:$0x1]
        %v227 = vadd.f32 %v194, %v195
        %v228 = vadd.f32 %v227, %v196
        %v229 = vadd.f32 %v228, %v197
        %v230 = vadd.f32 %v229, %v198
        %v231 = vadd.f32 %v230, %v199
        %v232 = vadd.f32 %v231, %v200
        %v233 = vadd.f32 %v232, %v201
        %v234 = vadd.f32 %v233, %v202
        %v235 = vadd.f32 %v234, %v203
        %v236 = vadd.f32 %v235, %v204
        %v237 = vadd.f32 %v236, %v205
        %v238 = vadd.f32 %v237, %v206
        %v239 = vadd.f32 %v238, %v207
        %v240 = vadd.f32 %v239, %v208
        %v241 = vadd.f32 %v240, %v209
        %v242 = vadd.f32 %v241, %v210
        %v243 = vadd.f32 %v242, %v211
        %v244 = vadd.f32 %v243, %v212
        %v245 = vadd.f32 %v244, %v213
        %v246 = vadd.f32 %v245, %v214
        %v247 = vadd.f32 %v246, %v215
        %v248 = vadd.f32 %v247, %v216
        %v249 = vadd.f32 %v248, %v217
        %v250 = vadd.f32 %v249, %v218
        %v251 = vadd.f32 %v250, %v219
        %v252 = vadd.f32 %v251, %v220
        %v253 = vadd.f32 %v252, %v221
        %v254 = vadd.f32 %v253, %v222
        %v255 = vadd.f32 %v254, %v223
        %v256 = vadd.f32 %v255, %v224
        %v257 = vadd.f32 %v256, %v225
        %v258 = vrot.slane %v257, 4
        %v259 = vadd.f32 %v257, %v258
        %v260 = vrot.slane %v259, 2
        %v261 = vadd.f32 %v259, %v260
        %v262 = vrot.slane %v261, 1
        %v263 = vadd.f32 %v261, %v262
        %v264 = vadd.f32 %v226, %v263
        %265 = vst [vmem:[%s180] sm:$0x1] %v264
        %v266 = vld [vmem:[%s186] sm:$0x1]
        %v267 = vmul.f32 %v194, %v194
        %v268 = vmul.f32 %v195, %v195
        %v269 = vmul.f32 %v196, %v196
        %v270 = vmul.f32 %v197, %v197
        %v271 = vmul.f32 %v198, %v198
        %v272 = vmul.f32 %v199, %v199
        %v273 = vmul.f32 %v200, %v200
        %v274 = vmul.f32 %v201, %v201
        %v275 = vmul.f32 %v202, %v202
        %v276 = vmul.f32 %v203, %v203
        %v277 = vmul.f32 %v204, %v204
        %v278 = vmul.f32 %v205, %v205
        %v279 = vmul.f32 %v206, %v206
        %v280 = vmul.f32 %v207, %v207
        %v281 = vmul.f32 %v208, %v208
        %v282 = vmul.f32 %v209, %v209
        %v283 = vmul.f32 %v210, %v210
        %v284 = vmul.f32 %v211, %v211
        %v285 = vmul.f32 %v212, %v212
        %v286 = vmul.f32 %v213, %v213
        %v287 = vmul.f32 %v214, %v214
        %v288 = vmul.f32 %v215, %v215
        %v289 = vmul.f32 %v216, %v216
        %v290 = vmul.f32 %v217, %v217
        %v291 = vmul.f32 %v218, %v218
        %v292 = vmul.f32 %v219, %v219
        %v293 = vmul.f32 %v220, %v220
        %v294 = vmul.f32 %v221, %v221
        %v295 = vmul.f32 %v222, %v222
        %v296 = vmul.f32 %v223, %v223
        %v297 = vmul.f32 %v224, %v224
        %v298 = vmul.f32 %v225, %v225
        %v299 = vadd.f32 %v267, %v268
        %v300 = vadd.f32 %v299, %v269
        %v301 = vadd.f32 %v300, %v270
        %v302 = vadd.f32 %v301, %v271
        %v303 = vadd.f32 %v302, %v272
        %v304 = vadd.f32 %v303, %v273
        %v305 = vadd.f32 %v304, %v274
        %v306 = vadd.f32 %v305, %v275
        %v307 = vadd.f32 %v306, %v276
        %v308 = vadd.f32 %v307, %v277
        %v309 = vadd.f32 %v308, %v278
        %v310 = vadd.f32 %v309, %v279
        %v311 = vadd.f32 %v310, %v280
        %v312 = vadd.f32 %v311, %v281
        %v313 = vadd.f32 %v312, %v282
        %v314 = vadd.f32 %v313, %v283
        %v315 = vadd.f32 %v314, %v284
        %v316 = vadd.f32 %v315, %v285
        %v317 = vadd.f32 %v316, %v286
        %v318 = vadd.f32 %v317, %v287
        %v319 = vadd.f32 %v318, %v288
        %v320 = vadd.f32 %v319, %v289
        %v321 = vadd.f32 %v320, %v290
        %v322 = vadd.f32 %v321, %v291
        %v323 = vadd.f32 %v322, %v292
        %v324 = vadd.f32 %v323, %v293
        %v325 = vadd.f32 %v324, %v294
        %v326 = vadd.f32 %v325, %v295
        %v327 = vadd.f32 %v326, %v296
        %v328 = vadd.f32 %v327, %v297
        %v329 = vadd.f32 %v328, %v298
        %v330 = vrot.slane %v329, 4
        %v331 = vadd.f32 %v329, %v330
        %v332 = vrot.slane %v331, 2
        %v333 = vadd.f32 %v331, %v332
        %v334 = vrot.slane %v333, 1
        %v335 = vadd.f32 %v333, %v334
        %v336 = vadd.f32 %v266, %v335
        %337 = vst [vmem:[%s186] sm:$0x1] %v336
        %s338 = sand.u32 %s71, 1
        %s339 = scalar_lea.sflag [#allocation4], %s338
        %s340 = sand.u32 %s71, 1
        %s341 = scalar_lea.vmem [#allocation5], %s340
        %s342 = sand.u32 %s97, 1
        %s343 = scalar_lea.sflag [#allocation7], %s342
        %s344 = sand.u32 %s97, 1
        %s345 = scalar_lea.vmem [#allocation6], %s344
        // Predicated region
        $region33: #{tpu_custom_call.1} parent=23 // pred_check
          %p346 = pneg %p81
        $region34: #{tpu_custom_call.1} parent=23 // pred_check_branch
          %348 = sbr.rel (%p346) target = $region36
        $region35: #{tpu_custom_call.1} parent=23 // pred_region
          %s350 = ssub.s32 16, 16
          %351 = vsyncadd %s339, %s350
          %s352 = smul.addr %s27, 16
          %s353 = scalar_lea.hbm %s1, %s352
          %s355 = sshll.u32 %s341, 4
          %s356 = int_to_ptr.vmem [resolvable:$true] %s355
          %358 = dma.vmem_to_hbm [thread:$0]  %s356, 16, %s353, %s339
        $region36: #{tpu_custom_call.1} parent=23 // pred_fallthru
          _
        // Predicated region
        $region37: #{tpu_custom_call.1} parent=23 // pred_check
          %p359 = pneg %p107
        $region38: #{tpu_custom_call.1} parent=23 // pred_check_branch
          %361 = sbr.rel (%p359) target = $region40
        $region39: #{tpu_custom_call.1} parent=23 // pred_region
          %s363 = ssub.s32 16, 16
          %364 = vsyncadd %s343, %s363
          %s365 = smul.addr %s27, 16
          %s366 = scalar_lea.hbm %s2, %s365
          %s368 = sshll.u32 %s345, 4
          %s369 = int_to_ptr.vmem [resolvable:$true] %s368
          %371 = dma.vmem_to_hbm [thread:$0]  %s369, 16, %s366, %s343
        $region40: #{tpu_custom_call.1} parent=23 // pred_fallthru
          _
      $region24: #{tpu_custom_call.1} parent=5 // pred_fallthru
        _
      %p372 = scmp.le.s32.totalorder 2, %s18
      // Predicated region
      $region41: #{tpu_custom_call.1} parent=5 // pred_check
        %p373 = pneg %p372
      $region42: #{tpu_custom_call.1} parent=5 // pred_check_branch
        %375 = sbr.rel (%p373) target = $region44
      $region43: #{tpu_custom_call.1} parent=5 // pred_region
        %s376 = ssub.s32 %s18, 2
        // Predicated region
        $region45: #{tpu_custom_call.1} parent=43 // pred_check
          %p377 = pneg %p87
        $region46: #{tpu_custom_call.1} parent=43 // pred_check_branch
          %379 = sbr.rel (%p377) target = $region48
        $region47: #{tpu_custom_call.1} parent=43 // pred_region
          %s380 = sand.u32 %s72, 1
          %s381 = scalar_lea.sflag [#allocation4], %s380
          %s382 = sand.u32 %s72, 1
          %s383 = scalar_lea.vmem [#allocation5], %s382
          %384 = dma.done %s381, 16
        $region48: #{tpu_custom_call.1} parent=43 // pred_fallthru
          _
        // Predicated region
        $region49: #{tpu_custom_call.1} parent=43 // pred_check
          %p385 = pneg %p113
        $region50: #{tpu_custom_call.1} parent=43 // pred_check_branch
          %387 = sbr.rel (%p385) target = $region52
        $region51: #{tpu_custom_call.1} parent=43 // pred_region
          %s388 = sand.u32 %s98, 1
          %s389 = scalar_lea.sflag [#allocation7], %s388
          %s390 = sand.u32 %s98, 1
          %s391 = scalar_lea.vmem [#allocation6], %s390
          %392 = dma.done %s389, 16
        $region52: #{tpu_custom_call.1} parent=43 // pred_fallthru
          _
      $region44: #{tpu_custom_call.1} parent=5 // pred_fallthru
        _
    $region6: #{tpu_custom_call.1} parent=1 // loop_footer
      %s22 = sadd.s32 1, %s18
    $region7: #{tpu_custom_call.1} parent=1 // loop_footer_branch
      %17 = sbr.rel target = $region3
    $region8: #{tpu_custom_call.1} parent=1 // loop_exit
      _
    %393 = vsyncpa [#allocation3], 1
    %s394 = scalar_lea.sflag [#allocation3], 1
    %395 = vsyncpa %s394, 1
    %396 = vsyncpa [#allocation4], 1
    %s397 = scalar_lea.sflag [#allocation4], 1
    %398 = vsyncpa %s397, 1
    %399 = vsyncpa [#allocation7], 1
    %s400 = scalar_lea.sflag [#allocation7], 1
    %401 = vsyncpa %s400, 1

</llo_original>
